<compile_context>
chip_gen: v6e
topology: v6e:2x2x1
jax: 0.10.0
libtpu: 0.0.40
codegen_flags: <defaults>
</compile_context>

<pallas_src>
import functools

import numpy as np

import jax
import jax.numpy as jnp
from jax.experimental import pallas as pl
from jax.experimental.pallas import tpu as pltpu

_LANE = 128
_MXU_ROWS = 256


def _round_up(x, m):
    return (x + m - 1) // m * m


def _pad_bytes(shape, itemsize):
    """VMEM footprint of a tile: last dim -> 128 lanes, 2nd-minor -> sublane tile."""
    sublane = 8 * max(1, 4 // itemsize)          # 8 for f32, 16 for bf16
    dims = list(shape)
    lead = 1
    for d in dims[:-2]:
        lead *= d
    sub = _round_up(dims[-2], sublane) if len(dims) >= 2 else 1
    lane = _round_up(dims[-1], _LANE)
    return lead * sub * lane * itemsize


def _tpu_config():
    """(vmem_limit_bytes, tile_budget_bytes, two_tensorcores_hint)."""
    cap = None
    try:
        cap = int(pltpu.get_tpu_info().vmem_capacity_bytes)
    except Exception:
        cap = None
    kind = ""
    try:
        kind = jax.devices()[0].device_kind.lower()
    except Exception:
        kind = ""
    two_tc = ("v7" in kind) or (cap is not None and cap <= 64 * 1024 * 1024)
    big_vmem_kind = any(t in kind for t in ("v4", "v5", "v6"))
    if (cap is not None and cap > 64 * 1024 * 1024 and not two_tc) or \
       (cap is None and big_vmem_kind and not two_tc):
        # v5e / v6e class: 128 MiB physical VMEM -> use most of it.
        return 100 * 1024 * 1024, 72 * 1024 * 1024, two_tc
    if cap is not None or two_tc:
        # v7x class: 64 MiB physical per TensorCore.
        return 40 * 1024 * 1024, 26 * 1024 * 1024, two_tc
    # Unknown chip: conservative defaults that are safe everywhere.
    return 32 * 1024 * 1024, 22 * 1024 * 1024, False


def _choose_group(bt, n):
    """Docs fused per block-diagonal aggregation matmul (fill ~256 MXU rows)."""
    if n >= _MXU_ROWS:
        return 1
    g = min(bt, max(1, _MXU_ROWS // n))
    while g > 1 and bt % g:
        g -= 1
    return g


def _choose_doc_tile(B, N, Din, Dp, itemsize, out_itemsize, *,
                     budget, min_steps=1, target_rows=4096):
    """Docs per grid step: fill the MXU / amortize per-step overhead, bounded by
    a padding-aware VMEM estimate and (on 2-core chips) by min_steps."""
    bt = min(B, max(1, -(-target_rows // N)))
    if min_steps > 1:
        bt = min(bt, max(1, -(-B // min_steps)))     # keep both v7x TCs busy
    # Align bt*N to the MXU row tile when possible (full final MXU pass).
    align = _MXU_ROWS // N if (0 < N < _MXU_ROWS and _MXU_ROWS % N == 0) else 1
    if align > 1 and bt >= align:
        bt = (bt // align) * align

    def est(b):
        g = _choose_group(b, N)
        gn = g * N
        vmem = 0
        vmem += 2 * _pad_bytes((b, N, Din), itemsize)       # x tile (double-buffered)
        vmem += 2 * _pad_bytes((b, N, N), itemsize)         # adj tile
        vmem += 2 * _pad_bytes((b, N, Dp), out_itemsize)    # output tile
        vmem += 2 * _pad_bytes((Din, Dp), itemsize)         # weight (conservative)
        vmem += 2 * _pad_bytes((1, Dp), 4)                  # bias
        vmem += 2 * _pad_bytes((gn, gn), itemsize)          # block pattern + bd matrix
        vmem += 2 * _pad_bytes((b, N, Dp), 4)               # f32 intermediates (xw / h)
        vmem += 1 << 20                                     # compiler scratch slack
        return vmem

    while bt > 1 and est(bt) > budget:
        bt = bt - align if bt > align else bt - 1
    return max(bt, 1)


def _aggregate(adj, feat, diag_mask, group):
    """h[b] = adj[b] @ feat[b].  adj (Bt,N,N), feat (Bt,N,D) -> (Bt,N,D) f32.

    For small N the per-doc matmuls badly underfill the MXU; fuse `group` docs
    into one block-diagonal (G*N, G*N) @ (G*N, D) matmul per MXU pass."""
    bt, n, _ = adj.shape
    d = feat.shape[-1]
    if group <= 1 or bt % group:
        return jnp.einsum("bij,bjd->bid", adj, feat,
                          preferred_element_type=jnp.float32)
    gn = group * n
    outs = []
    for g0 in range(0, bt, group):
        rows = adj[g0:g0 + group].reshape(gn, n)            # cheap leading-dim merge
        tiled = jnp.concatenate([rows] * group, axis=-1)    # (gn, gn) column tiling
        bd = tiled * diag_mask                              # keep only diagonal blocks
        h = jnp.dot(bd, feat[g0:g0 + group].reshape(gn, d),
                    preferred_element_type=jnp.float32)
        outs.append(h.reshape(group, n, d))
    return outs[0] if len(outs) == 1 else jnp.concatenate(outs, axis=0)


def _graph_layer_kernel(x_ref, adj_ref, m_ref, w_ref, b_ref, o_ref, *,
                        project_first, group):
    # x_ref:   (Bt, N, Din)   sentence features for Bt docs (f32 or bf16)
    # adj_ref: (Bt, N, N)     normalized adjacencies
    # m_ref:   (G*N, G*N)     0/1 block-diagonal pattern (constant, only if G>1)
    # w_ref:   (Din, Dp)      shared projection weight, lane-padded (Dp % 128 == 0)
    # b_ref:   (1, Dp)        shared bias, lane-padded, f32
    # o_ref:   (Bt, N, Dp)    output (f32 or bf16)
    x = x_ref[...]
    adj = adj_ref[...]
    diag_mask = m_ref[...]
    w = w_ref[...]
    b = b_ref[...]
    bt, n, din = x.shape
    dp = w.shape[1]

    # TODO(synk): dropout(p=0.3) on x is identity in eval mode; not applied here.
    if project_first:
        # (Bt*N, Din) @ (Din, Dp) on the MXU, then aggregate.  Better when Dout <= Din.
        xw = jnp.dot(x.reshape(bt * n, din), w,
                     preferred_element_type=jnp.float32).reshape(bt, n, dp)
        # Single cast when feeding the MXU (v5e has no bf16 VPU; keep casts minimal).
        h = _aggregate(adj, xw.astype(adj.dtype), diag_mask, group)
    else:
        # aggregate first, then (Bt*N, Din) @ (Din, Dp).  Better when Din < Dout.
        agg = _aggregate(adj, x, diag_mask, group)
        h = jnp.dot(agg.reshape(bt * n, din).astype(w.dtype), w,
                    preferred_element_type=jnp.float32).reshape(bt, n, dp)

    # Padding-mask multiply dropped: padded rows are discarded by the ragged gather.
    o_ref[...] = jnp.tanh(h + b).astype(o_ref.dtype)


@functools.partial(
    jax.jit,
    static_argnames=("dout", "bt", "project_first", "group", "out_dtype",
                     "vmem_limit", "single_buffered"))
def _dsg_seg_impl(doc_feature, adj, diag_mask, w_pad, b_pad, flat_idx, *,
                  dout, bt, project_first, group, out_dtype, vmem_limit,
                  single_buffered):
    B, N, Din = doc_feature.shape
    Dp = w_pad.shape[1]
    gn = diag_mask.shape[0]
    n_steps = -(-B // bt)
    B_pad = n_steps * bt
    if B_pad != B:
        pad = B_pad - B
        doc_feature = jnp.pad(doc_feature, ((0, pad), (0, 0), (0, 0)))
        adj = jnp.pad(adj, ((0, pad), (0, 0), (0, 0)))

    # Constant-index inputs (weight / bias / block pattern): single buffer is enough.
    const_kw = dict(pipeline_mode=pl.Buffered(1)) if single_buffered else {}

    kernel = functools.partial(_graph_layer_kernel,
                               project_first=project_first, group=group)
    out_pad = pl.pallas_call(
        kernel,
        out_shape=jax.ShapeDtypeStruct((B_pad, N, Dp), out_dtype),
        grid_spec=pltpu.PrefetchScalarGridSpec(
            num_scalar_prefetch=0,
            grid=(n_steps,),
            in_specs=[
                pl.BlockSpec((bt, N, Din), lambda b: (b, 0, 0)),
                pl.BlockSpec((bt, N, N), lambda b: (b, 0, 0)),
                pl.BlockSpec((gn, gn), lambda b: (0, 0), **const_kw),
                pl.BlockSpec((Din, Dp), lambda b: (0, 0), **const_kw),
                pl.BlockSpec((1, Dp), lambda b: (0, 0), **const_kw),
            ],
            out_specs=pl.BlockSpec((bt, N, Dp), lambda b: (b, 0, 0)),
        ),
        compiler_params=pltpu.CompilerParams(
            dimension_semantics=("parallel",),     # megacore-shardable on v7x
            vmem_limit_bytes=vmem_limit,
        ),
    )(doc_feature, adj, diag_mask, w_pad, b_pad)

    # TODO(synk): fuse this ragged pack into the kernel (scalar-prefetched per-doc
    # offsets + packed output writes) to avoid a second pass over the output.
    # Slice to the true Dout *before* the gather so it only reads Dout columns.
    flat = out_pad[..., :dout].reshape(B_pad * N, dout)
    return jnp.take(flat, flat_idx, axis=0).astype(jnp.float32)


def g_model_dsg_seg_forward(encoded_input, weight, bias, *,
                            compute_dtype=jnp.float32):
    """Mirror of g_model_DSG_SEG.forward.

    encoded_input = (doc_feature [B,N,Din], adj [B,N,N], mask [B,N,1],
                     sentences_per_doc  -- python list of ints)
    Returns (sent_repr [sum(sentences_per_doc), Dout], sentences_per_doc).
    """
    doc_feature, adj, mask, sentences_per_doc = encoded_input
    del mask  # padded rows never survive the ragged gather below

    B, N, Din = doc_feature.shape
    Dout = weight.shape[1]
    Dp = _round_up(Dout, _LANE)     # lane-dense weight / output columns

    w_pad = jnp.zeros((Din, Dp), jnp.float32).at[:, :Dout].set(weight)
    b_pad = jnp.zeros((1, Dp), jnp.float32).at[:, :Dout].set(
        jnp.reshape(bias, (1, Dout)))

    if compute_dtype == jnp.bfloat16:
        doc_feature = doc_feature.astype(jnp.bfloat16)
        adj = adj.astype(jnp.bfloat16)
        w_pad = w_pad.astype(jnp.bfloat16)
        out_dtype = jnp.bfloat16        # halves output HBM write traffic
    else:
        out_dtype = jnp.float32

    itemsize = jnp.dtype(compute_dtype).itemsize
    out_itemsize = jnp.dtype(out_dtype).itemsize
    vmem_limit, budget, two_tc = _tpu_config()
    min_steps = 2 if (two_tc and B >= 2) else 1
    bt = _choose_doc_tile(B, N, Din, Dp, itemsize, out_itemsize,
                          budget=budget, min_steps=min_steps)
    group = _choose_group(bt, N)
    # Aggregate over the narrower *real* feature width (decide on Dout, not Dp).
    project_first = Dout <= Din

    # 0/1 block-diagonal pattern for the fused aggregation matmul (tiny constant).
    diag_mask = jnp.asarray(
        np.kron(np.eye(group, dtype=np.float32), np.ones((N, N), np.float32)),
        dtype=compute_dtype)

    counts = [int(c) for c in sentences_per_doc]
    if counts:
        flat_idx = np.concatenate(
            [i * N + np.arange(c, dtype=np.int32) for i, c in enumerate(counts)]
        ).astype(np.int32)
    else:
        flat_idx = np.zeros((0,), np.int32)

    kwargs = dict(dout=Dout, bt=bt, project_first=project_first, group=group,
                  out_dtype=out_dtype, vmem_limit=vmem_limit)
    try:
        sent_repr = _dsg_seg_impl(doc_feature, adj, diag_mask, w_pad, b_pad,
                                  jnp.asarray(flat_idx),
                                  single_buffered=True, **kwargs)
    except Exception:
        # Older jax without pipeline_mode=pl.Buffered support: retry double-buffered.
        sent_repr = _dsg_seg_impl(doc_feature, adj, diag_mask, w_pad, b_pad,
                                  jnp.asarray(flat_idx),
                                  single_buffered=False, **kwargs)
    return sent_repr, sentences_per_doc


def _make_params(key, input_dim, output_dim):
    kw, kb = jax.random.split(key)
    limit = (6.0 / (input_dim + output_dim)) ** 0.5   # xavier-uniform, deterministic
    weight = jax.random.uniform(kw, (input_dim, output_dim), jnp.float32,
                                minval=-limit, maxval=limit)
    bias = jax.random.uniform(kb, (1, output_dim), jnp.float32,
                              minval=-0.1, maxval=0.1)
    return weight, bias


if __name__ == "__main__":
    def _build_inputs(key, B, N, Din, counts):
        k_feat, k_adj = jax.random.split(key)
        doc_feature = jax.random.normal(k_feat, (B, N, Din), jnp.float32)
        raw = jax.random.uniform(k_adj, (B, N, N), jnp.float32)
        adj = (raw + jnp.transpose(raw, (0, 2, 1))) * 0.5 + jnp.eye(N)[None]
        valid = (jnp.arange(N)[None, :] <
                 jnp.asarray(counts)[:, None]).astype(jnp.float32)
        adj = adj * valid[:, :, None] * valid[:, None, :]
        deg = jnp.clip(adj.sum(-1, keepdims=True), 1e-6, None)
        adj = adj / deg                                  # row-normalized
        mask = valid[:, :, None]                         # (B, N, 1)
        return doc_feature, adj, mask

    def _reference(doc_feature, adj, mask, weight, bias, counts):
        ref = jnp.tanh(
            jnp.einsum("bij,bjd->bid", adj,
                       jnp.einsum("bnd,de->bne", doc_feature, weight)) + bias) * mask
        return jnp.concatenate([ref[i, :counts[i]] for i in range(len(counts))], 0)

    key = jax.random.PRNGKey(0)
    k1, k2, kp1, kp2 = jax.random.split(key, 4)

    # Case 1: Din == Dout == 32 (project-first path), B=2 docs, N=16 sentences.
    B, N, Din, Dout = 2, 16, 32, 32
    counts = [5, 9]
    doc_feature, adj, mask = _build_inputs(k1, B, N, Din, counts)
    weight, bias = _make_params(kp1, Din, Dout)
    enc = (doc_feature, adj, mask, counts)

    sent, spd = g_model_dsg_seg_forward(enc, weight, bias)
    sent = jax.block_until_ready(sent)
    ref = _reference(doc_feature, adj, mask, weight, bias, counts)
    assert sent.shape == (sum(counts), Dout), sent.shape
    assert jnp.allclose(sent, ref, atol=1e-4), float(jnp.abs(sent - ref).max())

    # bf16 compute path (bf16 MXU feeds + bf16 output stream); looser tolerance.
    sent_bf16, _ = g_model_dsg_seg_forward(enc, weight, bias,
                                           compute_dtype=jnp.bfloat16)
    sent_bf16 = jax.block_until_ready(sent_bf16)
    assert sent_bf16.shape == (sum(counts), Dout)
    assert jnp.allclose(sent_bf16, ref, atol=5e-2, rtol=5e-2), \
        float(jnp.abs(sent_bf16 - ref).max())

    # Case 2: Din < Dout (aggregate-first path), Dout not a lane multiple.
    B2, N2, Din2, Dout2 = 3, 8, 16, 48
    counts2 = [3, 8, 5]
    doc_feature2, adj2, mask2 = _build_inputs(k2, B2, N2, Din2, counts2)
    weight2, bias2 = _make_params(kp2, Din2, Dout2)
    sent2, _ = g_model_dsg_seg_forward((doc_feature2, adj2, mask2, counts2),
                                       weight2, bias2)
    sent2 = jax.block_until_ready(sent2)
    ref2 = _reference(doc_feature2, adj2, mask2, weight2, bias2, counts2)
    assert sent2.shape == (sum(counts2), Dout2), sent2.shape
    assert jnp.allclose(sent2, ref2, atol=1e-4), float(jnp.abs(sent2 - ref2).max())

    print("KERNEL_OK")
</pallas_src>

<mosaic_0001>
module attributes {stable_mosaic.version = 11 : i64} {
  func.func @_graph_layer_kernel(%arg0: i32, %arg1: memref<2x16x32xf32, #tpu.memory_space<vmem>>, %arg2: memref<2x16x16xf32, #tpu.memory_space<vmem>>, %arg3: memref<32x32xf32, #tpu.memory_space<vmem>>, %arg4: memref<32x128xf32, #tpu.memory_space<vmem>>, %arg5: memref<1x128xf32, #tpu.memory_space<vmem>>, %arg6: memref<2x16x128xf32, #tpu.memory_space<vmem>>) attributes {dimension_semantics = [#tpu.dimension_semantics<parallel>], iteration_bounds = array<i64: 1>, scalar_prefetch = 0 : i64, scratch_operands = 0 : i64, tpu.core_type = #tpu.core_type<tc>, window_params = [{transform_indices = @transform_0, window_bounds = array<i64: 2, 16, 32>}, {transform_indices = @transform_1, window_bounds = array<i64: 2, 16, 16>}, {pipeline_mode = #tpu.pipeline_mode<synchronous>, transform_indices = @transform_2, window_bounds = array<i64: 32, 32>}, {pipeline_mode = #tpu.pipeline_mode<synchronous>, transform_indices = @transform_3, window_bounds = array<i64: 32, 128>}, {pipeline_mode = #tpu.pipeline_mode<synchronous>, transform_indices = @transform_4, window_bounds = array<i64: 1, 128>}, {transform_indices = @transform_5, window_bounds = array<i64: 2, 16, 128>}]} {
    %c0 = arith.constant 0 : index
    %c0_0 = arith.constant 0 : index
    %c0_1 = arith.constant 0 : index
    %0 = vector.load %arg1[%c0, %c0_0, %c0_1] : memref<2x16x32xf32, #tpu.memory_space<vmem>>, vector<2x16x32xf32>
    %c0_2 = arith.constant 0 : index
    %c0_3 = arith.constant 0 : index
    %c0_4 = arith.constant 0 : index
    %1 = vector.load %arg2[%c0_2, %c0_3, %c0_4] : memref<2x16x16xf32, #tpu.memory_space<vmem>>, vector<2x16x16xf32>
    %c0_5 = arith.constant 0 : index
    %c0_6 = arith.constant 0 : index
    %2 = vector.load %arg3[%c0_5, %c0_6] : memref<32x32xf32, #tpu.memory_space<vmem>>, vector<32x32xf32>
    %c0_7 = arith.constant 0 : index
    %c0_8 = arith.constant 0 : index
    %3 = vector.load %arg4[%c0_7, %c0_8] : memref<32x128xf32, #tpu.memory_space<vmem>>, vector<32x128xf32>
    %c0_9 = arith.constant 0 : index
    %c0_10 = arith.constant 0 : index
    %4 = vector.load %arg5[%c0_9, %c0_10] : memref<1x128xf32, #tpu.memory_space<vmem>>, vector<1x128xf32>
    %5 = vector.shape_cast %0 : vector<2x16x32xf32> to vector<32x32xf32>
    %cst = arith.constant dense<0.000000e+00> : vector<32x128xf32>
    %6 = tpu.matmul %5, %3, %cst {dimension_numbers = #tpu.dot_dimension_numbers<[1], [0], [0], [1], [0, 0, 1, 1], [], []>} : vector<32x32xf32>, vector<32x128xf32>, vector<32x128xf32> -> vector<32x128xf32>
    %7 = vector.shape_cast %6 : vector<32x128xf32> to vector<2x16x128xf32>
    %8 = vector.shape_cast %1 : vector<2x16x16xf32> to vector<32x16xf32>
    %9 = tpu.concatenate %8, %8 in 1 : vector<32x16xf32>, vector<32x16xf32> -> vector<32x32xf32>
    %10 = arith.mulf %9, %2 : vector<32x32xf32>
    %11 = vector.shape_cast %7 : vector<2x16x128xf32> to vector<32x128xf32>
    %cst_11 = arith.constant dense<0.000000e+00> : vector<32x128xf32>
    %12 = tpu.matmul %10, %11, %cst_11 {dimension_numbers = #tpu.dot_dimension_numbers<[1], [0], [0], [1], [0, 0, 1, 1], [], []>} : vector<32x32xf32>, vector<32x128xf32>, vector<32x128xf32> -> vector<32x128xf32>
    %13 = vector.shape_cast %12 : vector<32x128xf32> to vector<2x16x128xf32>
    %14 = vector.shape_cast %4 : vector<1x128xf32> to vector<1x1x128xf32>
    %15 = vector.broadcast %14 : vector<1x1x128xf32> to vector<2x16x128xf32>
    %16 = arith.addf %13, %15 : vector<2x16x128xf32>
    %17 = math.tanh %16 : vector<2x16x128xf32>
    %c0_12 = arith.constant 0 : index
    %c0_13 = arith.constant 0 : index
    %c0_14 = arith.constant 0 : index
    %18 = vector.load %arg6[%c0_12, %c0_13, %c0_14] : memref<2x16x128xf32, #tpu.memory_space<vmem>>, vector<2x16x128xf32>
    tpu.vector_store %arg6[%c0_12, %c0_13, %c0_14], %17 {strides = array<i32>} : memref<2x16x128xf32, #tpu.memory_space<vmem>>, vector<2x16x128xf32>,
    return
  }
  func.func @transform_0(%arg0: i32) -> (i32, i32, i32) {
    %c0_i32 = arith.constant 0 : i32
    %c0_i32_0 = arith.constant 0 : i32
    %c0_i32_1 = arith.constant 0 : i32
    return %arg0, %c0_i32, %c0_i32_0 : i32, i32, i32
  }
  func.func @transform_1(%arg0: i32) -> (i32, i32, i32) {
    %c0_i32 = arith.constant 0 : i32
    %c0_i32_0 = arith.constant 0 : i32
    %c0_i32_1 = arith.constant 0 : i32
    return %arg0, %c0_i32, %c0_i32_0 : i32, i32, i32
  }
  func.func @transform_2(%arg0: i32) -> (i32, i32) {
    %c0_i32 = arith.constant 0 : i32
    %c0_i32_0 = arith.constant 0 : i32
    %c0_i32_1 = arith.constant 0 : i32
    return %c0_i32, %c0_i32_0 : i32, i32
  }
  func.func @transform_3(%arg0: i32) -> (i32, i32) {
    %c0_i32 = arith.constant 0 : i32
    %c0_i32_0 = arith.constant 0 : i32
    %c0_i32_1 = arith.constant 0 : i32
    return %c0_i32, %c0_i32_0 : i32, i32
  }
  func.func @transform_4(%arg0: i32) -> (i32, i32) {
    %c0_i32 = arith.constant 0 : i32
    %c0_i32_0 = arith.constant 0 : i32
    %c0_i32_1 = arith.constant 0 : i32
    return %c0_i32, %c0_i32_0 : i32, i32
  }
  func.func @transform_5(%arg0: i32) -> (i32, i32, i32) {
    %c0_i32 = arith.constant 0 : i32
    %c0_i32_0 = arith.constant 0 : i32
    %c0_i32_1 = arith.constant 0 : i32
    return %arg0, %c0_i32, %c0_i32_0 : i32, i32, i32
  }
}

module attributes {stable_mosaic.version = 11 : i64} {
  func.func @_graph_layer_kernel(%arg0: i32, %arg1: memref<2x16x32xf32, #tpu.memory_space<vmem>>, %arg2: memref<2x16x16xf32, #tpu.memory_space<vmem>>, %arg3: memref<32x32xf32, #tpu.memory_space<vmem>>, %arg4: memref<32x128xf32, #tpu.memory_space<vmem>>, %arg5: memref<1x128xf32, #tpu.memory_space<vmem>>, %arg6: memref<2x16x128xf32, #tpu.memory_space<vmem>>) attributes {dimension_semantics = [#tpu.dimension_semantics<parallel>], iteration_bounds = array<i64: 1>, scalar_prefetch = 0 : i64, scratch_operands = 0 : i64, tpu.core_type = #tpu.core_type<tc>, window_params = [{transform_indices = @transform_0, window_bounds = array<i64: 2, 16, 32>}, {transform_indices = @transform_1, window_bounds = array<i64: 2, 16, 16>}, {pipeline_mode = #tpu.pipeline_mode<synchronous>, transform_indices = @transform_2, window_bounds = array<i64: 32, 32>}, {pipeline_mode = #tpu.pipeline_mode<synchronous>, transform_indices = @transform_3, window_bounds = array<i64: 32, 128>}, {pipeline_mode = #tpu.pipeline_mode<synchronous>, transform_indices = @transform_4, window_bounds = array<i64: 1, 128>}, {transform_indices = @transform_5, window_bounds = array<i64: 2, 16, 128>}]} {
    %c0 = arith.constant 0 : index
    %c0_0 = arith.constant 0 : index
    %c0_1 = arith.constant 0 : index
    %0 = vector.load %arg1[%c0, %c0_0, %c0_1] : memref<2x16x32xf32, #tpu.memory_space<vmem>>, vector<2x16x32xf32>
    %c0_2 = arith.constant 0 : index
    %c0_3 = arith.constant 0 : index
    %c0_4 = arith.constant 0 : index
    %1 = vector.load %arg2[%c0_2, %c0_3, %c0_4] : memref<2x16x16xf32, #tpu.memory_space<vmem>>, vector<2x16x16xf32>
    %c0_5 = arith.constant 0 : index
    %c0_6 = arith.constant 0 : index
    %2 = vector.load %arg3[%c0_5, %c0_6] : memref<32x32xf32, #tpu.memory_space<vmem>>, vector<32x32xf32>
    %c0_7 = arith.constant 0 : index
    %c0_8 = arith.constant 0 : index
    %3 = vector.load %arg4[%c0_7, %c0_8] : memref<32x128xf32, #tpu.memory_space<vmem>>, vector<32x128xf32>
    %c0_9 = arith.constant 0 : index
    %c0_10 = arith.constant 0 : index
    %4 = vector.load %arg5[%c0_9, %c0_10] : memref<1x128xf32, #tpu.memory_space<vmem>>, vector<1x128xf32>
    %5 = vector.shape_cast %0 : vector<2x16x32xf32> to vector<32x32xf32>
    %cst = arith.constant dense<0.000000e+00> : vector<32x128xf32>
    %6 = tpu.matmul %5, %3, %cst {dimension_numbers = #tpu.dot_dimension_numbers<[1], [0], [0], [1], [0, 0, 1, 1], [], []>} : vector<32x32xf32>, vector<32x128xf32>, vector<32x128xf32> -> vector<32x128xf32>
    %7 = vector.shape_cast %6 : vector<32x128xf32> to vector<2x16x128xf32>
    %8 = vector.shape_cast %1 : vector<2x16x16xf32> to vector<32x16xf32>
    %9 = tpu.concatenate %8, %8 in 1 : vector<32x16xf32>, vector<32x16xf32> -> vector<32x32xf32>
    %10 = arith.mulf %9, %2 : vector<32x32xf32>
    %11 = vector.shape_cast %7 : vector<2x16x128xf32> to vector<32x128xf32>
    %cst_11 = arith.constant dense<0.000000e+00> : vector<32x128xf32>
    %12 = tpu.matmul %10, %11, %cst_11 {dimension_numbers = #tpu.dot_dimension_numbers<[1], [0], [0], [1], [0, 0, 1, 1], [], []>} : vector<32x32xf32>, vector<32x128xf32>, vector<32x128xf32> -> vector<32x128xf32>
    %13 = vector.shape_cast %12 : vector<32x128xf32> to vector<2x16x128xf32>
    %14 = vector.shape_cast %4 : vector<1x128xf32> to vector<1x1x128xf32>
    %15 = vector.broadcast %14 : vector<1x1x128xf32> to vector<2x16x128xf32>
    %16 = arith.addf %13, %15 : vector<2x16x128xf32>
    %17 = math.tanh %16 : vector<2x16x128xf32>
    %c0_12 = arith.constant 0 : index
    %c0_13 = arith.constant 0 : index
    %c0_14 = arith.constant 0 : index
    %18 = vector.load %arg6[%c0_12, %c0_13, %c0_14] : memref<2x16x128xf32, #tpu.memory_space<vmem>>, vector<2x16x128xf32>
    tpu.vector_store %arg6[%c0_12, %c0_13, %c0_14], %17 {strides = array<i32>} : memref<2x16x128xf32, #tpu.memory_space<vmem>>, vector<2x16x128xf32>,
    return
  }
  func.func @transform_0(%arg0: i32) -> (i32, i32, i32) {
    %c0_i32 = arith.constant 0 : i32
    %c0_i32_0 = arith.constant 0 : i32
    %c0_i32_1 = arith.constant 0 : i32
    return %arg0, %c0_i32, %c0_i32_0 : i32, i32, i32
  }
  func.func @transform_1(%arg0: i32) -> (i32, i32, i32) {
    %c0_i32 = arith.constant 0 : i32
    %c0_i32_0 = arith.constant 0 : i32
    %c0_i32_1 = arith.constant 0 : i32
    return %arg0, %c0_i32, %c0_i32_0 : i32, i32, i32
  }
  func.func @transform_2(%arg0: i32) -> (i32, i32) {
    %c0_i32 = arith.constant 0 : i32
    %c0_i32_0 = arith.constant 0 : i32
    %c0_i32_1 = arith.constant 0 : i32
    return %c0_i32, %c0_i32_0 : i32, i32
  }
  func.func @transform_3(%arg0: i32) -> (i32, i32) {
    %c0_i32 = arith.constant 0 : i32
    %c0_i32_0 = arith.constant 0 : i32
    %c0_i32_1 = arith.constant 0 : i32
    return %c0_i32, %c0_i32_0 : i32, i32
  }
  func.func @transform_4(%arg0: i32) -> (i32, i32) {
    %c0_i32 = arith.constant 0 : i32
    %c0_i32_0 = arith.constant 0 : i32
    %c0_i32_1 = arith.constant 0 : i32
    return %c0_i32, %c0_i32_0 : i32, i32
  }
  func.func @transform_5(%arg0: i32) -> (i32, i32, i32) {
    %c0_i32 = arith.constant 0 : i32
    %c0_i32_0 = arith.constant 0 : i32
    %c0_i32_1 = arith.constant 0 : i32
    return %arg0, %c0_i32, %c0_i32_0 : i32, i32, i32
  }
}

</mosaic_0001>

<llo_original>
// kernel: _dsg_seg_impl.1
$region0: #{_dsg_seg_impl.1}
  #allocation0 [shape = 'u32[]', space=smem, size = 0x4, offset = 0x4, fixed_abs, tag = 'smem constant byte address 0x4 - core index']
  #allocation1 [shape = 'u32[144,128]{1,0:T(1,128)}', space=vmem, size = 0x12000, scoped, tag = 'internal scratch']
  %s0 = inlined_call_operand.hbm [shape: f32[2,16,32], index: 0, kind: input, shape index: {}]
  %s1 = inlined_call_operand.hbm [shape: f32[2,16,16], index: 1, kind: input, shape index: {}]
  %s2 = inlined_call_operand.hbm [shape: f32[32,32], index: 2, kind: input, shape index: {}]
  %s3 = inlined_call_operand.hbm [shape: f32[32,128], index: 3, kind: input, shape index: {}]
  %s4 = inlined_call_operand.vmem [shape: f32[1,128], index: 4, kind: input, shape index: {}]
  %s5 = inlined_call_operand.vmem [shape: f32[2,16,128], index: 5, kind: output, shape index: {}]
  %s6 = sld [smem:[#allocation0]]
  $region46: #{_dsg_seg_impl.1} parent=0
    _
  %s8 = ssub.s32 1, %s6
  %s9 = scalar_select 0, %s8, %s6
  $region1: #{_dsg_seg_impl.1} parent=0
    #allocation2 [shape = 'u8[16384]{0}', space=vmem, size = 0x4000, scoped, tag = 'input window, operand 0, single buffered']
    #allocation3 [shape = 's32[1]{0}', space=sflag, size = 0x4, scoped, tag = 'scoped memory for _dsg_seg_impl.1']
    #allocation4 [shape = 'u8[16384]{0}', space=vmem, size = 0x4000, scoped, tag = 'input window, operand 1, single buffered']
    #allocation5 [shape = 's32[1]{0}', space=sflag, size = 0x4, scoped, tag = 'scoped memory for _dsg_seg_impl.1']
    #allocation6 [shape = 'u8[16384]{0}', space=vmem, size = 0x4000, scoped, tag = 'input window, operand 2, single buffered']
    #allocation7 [shape = 'u8[16384]{0}', space=vmem, size = 0x4000, scoped, tag = 'input window, operand 3, single buffered']
    #allocation8 [shape = 's32[1]{0}', space=sflag, size = 0x4, scoped, tag = 'scoped memory for _dsg_seg_impl.1']
    %10 = vsyncpa [#allocation3], 0
    %11 = vsyncpa [#allocation5], 0
    %12 = vsyncpa [#allocation8], 0
    // Predicated region
    $region2: #{_dsg_seg_impl.1} parent=1 // pred_check
      _
    $region3: #{_dsg_seg_impl.1} parent=1 // pred_check_branch
      %14 = sbr.rel (0) target = $region5
    $region4: #{_dsg_seg_impl.1} parent=1 // pred_region
      %s16 = ssub.s32 512, 512
      %17 = vsyncadd [#allocation3], %s16
      %s18 = sshll.u32 [#allocation2], 4
      %s19 = int_to_ptr.vmem [resolvable:$true] %s18
      %24 = dma.hbm_to_vmem [thread:$0]  %s0, 512, %s19, [#allocation3], 128, 128, 8
    $region5: #{_dsg_seg_impl.1} parent=1 // pred_fallthru
      _
    // Predicated region
    $region6: #{_dsg_seg_impl.1} parent=1 // pred_check
      _
    $region7: #{_dsg_seg_impl.1} parent=1 // pred_check_branch
      %26 = sbr.rel (0) target = $region9
    $region8: #{_dsg_seg_impl.1} parent=1 // pred_region
      %s28 = ssub.s32 512, 512
      %29 = vsyncadd [#allocation5], %s28
      %s30 = sshll.u32 [#allocation4], 4
      %s31 = int_to_ptr.vmem [resolvable:$true] %s30
      %36 = dma.hbm_to_vmem [thread:$0]  %s1, 512, %s31, [#allocation5], 128, 128, 8
    $region9: #{_dsg_seg_impl.1} parent=1 // pred_fallthru
      _
    // Predicated region
    $region10: #{_dsg_seg_impl.1} parent=1 // pred_check
      _
    $region11: #{_dsg_seg_impl.1} parent=1 // pred_check_branch
      %38 = sbr.rel (0) target = $region13
    $region12: #{_dsg_seg_impl.1} parent=1 // pred_region
      %s40 = ssub.s32 512, 512
      %41 = vsyncadd [#allocation5], %s40
      %s42 = sshll.u32 [#allocation6], 4
      %s43 = int_to_ptr.vmem [resolvable:$true] %s42
      %48 = dma.hbm_to_vmem [thread:$0]  %s2, 512, %s43, [#allocation5], 128, 128, 8
    $region13: #{_dsg_seg_impl.1} parent=1 // pred_fallthru
      _
    // Predicated region
    $region14: #{_dsg_seg_impl.1} parent=1 // pred_check
      _
    $region15: #{_dsg_seg_impl.1} parent=1 // pred_check_branch
      %50 = sbr.rel (0) target = $region17
    $region16: #{_dsg_seg_impl.1} parent=1 // pred_region
      %s52 = ssub.s32 512, 512
      %53 = vsyncadd [#allocation8], %s52
      %s54 = sshll.u32 [#allocation7], 4
      %s55 = int_to_ptr.vmem [resolvable:$true] %s54
      %60 = dma.hbm_to_vmem [thread:$0]  %s3, 512, %s55, [#allocation8], 128, 128, 8
    $region17: #{_dsg_seg_impl.1} parent=1 // pred_fallthru
      _
    // Predicated region
    $region18: #{_dsg_seg_impl.1} parent=1 // pred_check
      _
    $region19: #{_dsg_seg_impl.1} parent=1 // pred_check_branch
      %62 = sbr.rel (0) target = $region21
    $region20: #{_dsg_seg_impl.1} parent=1 // pred_region
      _
    $region21: #{_dsg_seg_impl.1} parent=1 // pred_fallthru
      _
    // Predicated region
    $region22: #{_dsg_seg_impl.1} parent=1 // pred_check
      _
    $region23: #{_dsg_seg_impl.1} parent=1 // pred_check_branch
      %64 = sbr.rel (0) target = $region25
    $region24: #{_dsg_seg_impl.1} parent=1 // pred_region
      %65 = dma.done [#allocation3], 512
    $region25: #{_dsg_seg_impl.1} parent=1 // pred_fallthru
      _
    // Predicated region
    $region26: #{_dsg_seg_impl.1} parent=1 // pred_check
      _
    $region27: #{_dsg_seg_impl.1} parent=1 // pred_check_branch
      %67 = sbr.rel (0) target = $region29
    $region28: #{_dsg_seg_impl.1} parent=1 // pred_region
      %68 = dma.done [#allocation5], 512
    $region29: #{_dsg_seg_impl.1} parent=1 // pred_fallthru
      _
    // Predicated region
    $region30: #{_dsg_seg_impl.1} parent=1 // pred_check
      _
    $region31: #{_dsg_seg_impl.1} parent=1 // pred_check_branch
      %70 = sbr.rel (0) target = $region33
    $region32: #{_dsg_seg_impl.1} parent=1 // pred_region
      %71 = dma.done [#allocation5], 512
    $region33: #{_dsg_seg_impl.1} parent=1 // pred_fallthru
      _
    // Predicated region
    $region34: #{_dsg_seg_impl.1} parent=1 // pred_check
      _
    $region35: #{_dsg_seg_impl.1} parent=1 // pred_check_branch
      %73 = sbr.rel (0) target = $region37
    $region36: #{_dsg_seg_impl.1} parent=1 // pred_region
      %74 = dma.done [#allocation8], 512
    $region37: #{_dsg_seg_impl.1} parent=1 // pred_fallthru
      _
    %v75 = vld [vmem:[#allocation2] sm:$0xff]
    %v76 = vld [vmem:[#allocation2 + $0x8] sm:$0xff]
    %v77 = vld [vmem:[#allocation2 + $0x10] sm:$0xff]
    %v78 = vld [vmem:[#allocation2 + $0x18] sm:$0xff]
    %v79 = vld [vmem:[#allocation4] sm:$0xff]
    %v80 = vld [vmem:[#allocation4 + $0x8] sm:$0xff]
    %v81 = vld [vmem:[#allocation4 + $0x10] sm:$0xff]
    %v82 = vld [vmem:[#allocation4 + $0x18] sm:$0xff]
    %v83 = vld [vmem:[#allocation6] sm:$0xff]
    %v84 = vld [vmem:[#allocation6 + $0x8] sm:$0xff]
    %v85 = vld [vmem:[#allocation6 + $0x10] sm:$0xff]
    %v86 = vld [vmem:[#allocation6 + $0x18] sm:$0xff]
    %v87 = vld [vmem:[#allocation7] sm:$0xff]
    %v88 = vld [vmem:[#allocation7 + $0x8] sm:$0xff]
    %v89 = vld [vmem:[#allocation7 + $0x10] sm:$0xff]
    %v90 = vld [vmem:[#allocation7 + $0x18] sm:$0xff]
    %v91 = vld [vmem:[%s4] sm:$0x1]
    %vm92 = vcmask 261120
    %v94 = vsel %vm92, %v75, 0
    %v97 = vsel %vm92, %v76, 0
    %v100 = vsel %vm92, %v77, 0
    %v103 = vsel %vm92, %v78, 0
    %105 = vmatprep.subr.mxu0 0.0
    %106 = vmatpush1.msra.mxu0 0.0
    %107 = vmatprep.subr.mxu0 0.0
    %108 = vmatpush1.msra.mxu0 0.0
    %109 = vmatprep.subr.mxu0 0.0
    %110 = vmatpush1.msra.mxu0 0.0
    %111 = vmatprep.subr.mxu0 0.0
    %112 = vmatpush1.msra.mxu0 0.0
    %113 = vmatprep.subr.mxu0 0.0
    %114 = vmatpush1.msra.mxu0 0.0
    %115 = vmatprep.subr.mxu0 0.0
    %116 = vmatpush1.msra.mxu0 0.0
    %117 = vmatprep.subr.mxu0 0.0
    %118 = vmatpush1.msra.mxu0 0.0
    %119 = vmatprep.subr.mxu0 0.0
    %120 = vmatpush1.msra.mxu0 0.0
    %121 = vmatprep.subr.mxu0 0.0
    %122 = vmatpush1.msra.mxu0 0.0
    %123 = vmatprep.subr.mxu0 0.0
    %124 = vmatpush1.msra.mxu0 0.0
    %125 = vmatprep.subr.mxu0 0.0
    %126 = vmatpush1.msra.mxu0 0.0
    %127 = vmatprep.subr.mxu0 0.0
    %128 = vmatpush1.msra.mxu0 0.0
    %129 = vmatprep.subr.mxu0 0.0
    %130 = vmatpush1.msra.mxu0 %v90
    %131 = vmatprep.subr.mxu0 0.0
    %132 = vmatpush1.msra.mxu0 %v89
    %133 = vmatprep.subr.mxu0 0.0
    %134 = vmatpush1.msra.mxu0 %v88
    %135 = vmatprep.subr.mxu0 0.0
    %136 = vmatpush1.msra.mxu0 %v87
    %137 = vmatprep.subr.mxu0 0.0
    %138 = vmatpush2.msra.mxu0 0.0
    %139 = vmatprep.subr.mxu0 0.0
    %140 = vmatpush2.msra.mxu0 0.0
    %141 = vmatprep.subr.mxu0 0.0
    %142 = vmatpush2.msra.mxu0 0.0
    %143 = vmatprep.subr.mxu0 0.0
    %144 = vmatpush2.msra.mxu0 0.0
    %145 = vmatprep.subr.mxu0 0.0
    %146 = vmatpush2.msra.mxu0 0.0
    %147 = vmatprep.subr.mxu0 0.0
    %148 = vmatpush2.msra.mxu0 0.0
    %149 = vmatprep.subr.mxu0 0.0
    %150 = vmatpush2.msra.mxu0 0.0
    %151 = vmatprep.subr.mxu0 0.0
    %152 = vmatpush2.msra.mxu0 0.0
    %153 = vmatprep.subr.mxu0 0.0
    %154 = vmatpush2.msra.mxu0 0.0
    %155 = vmatprep.subr.mxu0 0.0
    %156 = vmatpush2.msra.mxu0 0.0
    %157 = vmatprep.subr.mxu0 0.0
    %158 = vmatpush2.msra.mxu0 0.0
    %159 = vmatprep.subr.mxu0 0.0
    %160 = vmatpush2.msra.mxu0 0.0
    %161 = vmatprep.subr.mxu0 0.0
    %162 = vmatpush2.msra.mxu0 0.0
    %163 = vmatprep.subr.mxu0 0.0
    %164 = vmatpush2.msra.mxu0 0.0
    %165 = vmatprep.subr.mxu0 0.0
    %166 = vmatpush2.msra.mxu0 0.0
    %167 = vmatprep.subr.mxu0 0.0
    %168 = vmatpush2.msra.mxu0 0.0
    %169 = vmatprep.mubr.f32.mxu0 0.0
    %170 = vmatmul.mubr.f32.gmra.mxu0 %v94
    %v171 = vpop.f32.mrf.mxu0
    %v172 = vadd.f32 0.0, %v171
    %v173 = vpop.f32.mrf.mxu0
    %174 = vmatprep.mubr.f32.mxu0 0.0
    %175 = vmatmul.mubr.f32.gmra.mxu0 %v97
    %v176 = vpop.f32.mrf.mxu0
    %v177 = vadd.f32 0.0, %v176
    %v178 = vpop.f32.mrf.mxu0
    %179 = vmatprep.mubr.f32.mxu0 0.0
    %180 = vmatmul.mubr.f32.gmra.mxu0 %v100
    %v181 = vpop.f32.mrf.mxu0
    %v182 = vadd.f32 0.0, %v181
    %v183 = vpop.f32.mrf.mxu0
    %184 = vmatprep.mubr.f32.mxu0 0.0
    %185 = vmatmul.mubr.f32.gmra.mxu0 %v103
    %v186 = vpop.f32.mrf.mxu0
    %v187 = vadd.f32 0.0, %v186
    %v188 = vpop.f32.mrf.mxu0
    %189 = vdwg.mxu0
    %194 = vrot.lane.b32.xlu0 %v79, 16
    %v195 = vpop.permute.xlu0 %194
    %196 = vrot.lane.b32.xlu0 %v80, 16
    %v197 = vpop.permute.xlu0 %196
    %198 = vrot.lane.b32.xlu0 %v81, 16
    %v199 = vpop.permute.xlu0 %198
    %200 = vrot.lane.b32.xlu0 %v82, 16
    %v201 = vpop.permute.xlu0 %200
    %vm206 = vcmask 130048
    %v207 = vsel %vm206, %v79, %v195
    %v208 = vsel %vm206, %v80, %v197
    %v209 = vsel %vm206, %v81, %v199
    %v210 = vsel %vm206, %v82, %v201
    %v211 = vmul.f32 %v207, %v83
    %v212 = vmul.f32 %v208, %v84
    %v213 = vmul.f32 %v209, %v85
    %v214 = vmul.f32 %v210, %v86
    %v216 = vsel %vm92, %v211, 0
    %v219 = vsel %vm92, %v212, 0
    %v222 = vsel %vm92, %v213, 0
    %v225 = vsel %vm92, %v214, 0
    %227 = vmatprep.subr.mxu0 0.0
    %228 = vmatpush1.msra.mxu0 0.0
    %229 = vmatprep.subr.mxu0 0.0
    %230 = vmatpush1.msra.mxu0 0.0
    %231 = vmatprep.subr.mxu0 0.0
    %232 = vmatpush1.msra.mxu0 0.0
    %233 = vmatprep.subr.mxu0 0.0
    %234 = vmatpush1.msra.mxu0 0.0
    %235 = vmatprep.subr.mxu0 0.0
    %236 = vmatpush1.msra.mxu0 0.0
    %237 = vmatprep.subr.mxu0 0.0
    %238 = vmatpush1.msra.mxu0 0.0
    %239 = vmatprep.subr.mxu0 0.0
    %240 = vmatpush1.msra.mxu0 0.0
    %241 = vmatprep.subr.mxu0 0.0
    %242 = vmatpush1.msra.mxu0 0.0
    %243 = vmatprep.subr.mxu0 0.0
    %244 = vmatpush1.msra.mxu0 0.0
    %245 = vmatprep.subr.mxu0 0.0
    %246 = vmatpush1.msra.mxu0 0.0
    %247 = vmatprep.subr.mxu0 0.0
    %248 = vmatpush1.msra.mxu0 0.0
    %249 = vmatprep.subr.mxu0 0.0
    %250 = vmatpush1.msra.mxu0 0.0
    %251 = vmatprep.subr.mxu0 0.0
    %252 = vmatpush1.msra.mxu0 %v187
    %253 = vmatprep.subr.mxu0 0.0
    %254 = vmatpush1.msra.mxu0 %v182
    %255 = vmatprep.subr.mxu0 0.0
    %256 = vmatpush1.msra.mxu0 %v177
    %257 = vmatprep.subr.mxu0 0.0
    %258 = vmatpush1.msra.mxu0 %v172
    %259 = vmatprep.subr.mxu0 0.0
    %260 = vmatpush2.msra.mxu0 0.0
    %261 = vmatprep.subr.mxu0 0.0
    %262 = vmatpush2.msra.mxu0 0.0
    %263 = vmatprep.subr.mxu0 0.0
    %264 = vmatpush2.msra.mxu0 0.0
    %265 = vmatprep.subr.mxu0 0.0
    %266 = vmatpush2.msra.mxu0 0.0
    %267 = vmatprep.subr.mxu0 0.0
    %268 = vmatpush2.msra.mxu0 0.0
    %269 = vmatprep.subr.mxu0 0.0
    %270 = vmatpush2.msra.mxu0 0.0
    %271 = vmatprep.subr.mxu0 0.0
    %272 = vmatpush2.msra.mxu0 0.0
    %273 = vmatprep.subr.mxu0 0.0
    %274 = vmatpush2.msra.mxu0 0.0
    %275 = vmatprep.subr.mxu0 0.0
    %276 = vmatpush2.msra.mxu0 0.0
    %277 = vmatprep.subr.mxu0 0.0
    %278 = vmatpush2.msra.mxu0 0.0
    %279 = vmatprep.subr.mxu0 0.0
    %280 = vmatpush2.msra.mxu0 0.0
    %281 = vmatprep.subr.mxu0 0.0
    %282 = vmatpush2.msra.mxu0 0.0
    %283 = vmatprep.subr.mxu0 0.0
    %284 = vmatpush2.msra.mxu0 0.0
    %285 = vmatprep.subr.mxu0 0.0
    %286 = vmatpush2.msra.mxu0 0.0
    %287 = vmatprep.subr.mxu0 0.0
    %288 = vmatpush2.msra.mxu0 0.0
    %289 = vmatprep.subr.mxu0 0.0
    %290 = vmatpush2.msra.mxu0 0.0
    %291 = vmatprep.mubr.f32.mxu0 0.0
    %292 = vmatmul.mubr.f32.gmra.mxu0 %v216
    %v293 = vpop.f32.mrf.mxu0
    %v294 = vadd.f32 0.0, %v293
    %v295 = vpop.f32.mrf.mxu0
    %296 = vmatprep.mubr.f32.mxu0 0.0
    %297 = vmatmul.mubr.f32.gmra.mxu0 %v219
    %v298 = vpop.f32.mrf.mxu0
    %v299 = vadd.f32 0.0, %v298
    %v300 = vpop.f32.mrf.mxu0
    %301 = vmatprep.mubr.f32.mxu0 0.0
    %302 = vmatmul.mubr.f32.gmra.mxu0 %v222
    %v303 = vpop.f32.mrf.mxu0
    %v304 = vadd.f32 0.0, %v303
    %v305 = vpop.f32.mrf.mxu0
    %306 = vmatprep.mubr.f32.mxu0 0.0
    %307 = vmatmul.mubr.f32.gmra.mxu0 %v225
    %v308 = vpop.f32.mrf.mxu0
    %v309 = vadd.f32 0.0, %v308
    %v310 = vpop.f32.mrf.mxu0
    %311 = vdwg.mxu0
    %v313 = vlaneseq
    %v314 = vshrl.u32 %v313, 7
    %v315 = vsub.s32 0, %v314
    %v316 = vrot.slane %v91, %v315
    %v318 = vadd.f32 %v294, %v316
    %v319 = vadd.f32 %v299, %v316
    %v320 = vadd.f32 %v304, %v316
    %v321 = vadd.f32 %v309, %v316
    %v322 = vtanh.pop %v318
    %v323 = vtanh.pop %v319
    %v324 = vtanh.pop %v320
    %v325 = vtanh.pop %v321
    %326 = vst [vmem:[%s5] sm:$0xff] %v322
    %327 = vst [vmem:[%s5 + $0x8] sm:$0xff] %v323
    %328 = vst [vmem:[%s5 + $0x10] sm:$0xff] %v324
    %329 = vst [vmem:[%s5 + $0x18] sm:$0xff] %v325
    // Predicated region
    $region38: #{_dsg_seg_impl.1} parent=1 // pred_check
      _
    $region39: #{_dsg_seg_impl.1} parent=1 // pred_check_branch
      %331 = sbr.rel (0) target = $region41
    $region40: #{_dsg_seg_impl.1} parent=1 // pred_region
      _
    $region41: #{_dsg_seg_impl.1} parent=1 // pred_fallthru
      _
    // Predicated region
    $region42: #{_dsg_seg_impl.1} parent=1 // pred_check
      _
    $region43: #{_dsg_seg_impl.1} parent=1 // pred_check_branch
      %333 = sbr.rel (0) target = $region45
    $region44: #{_dsg_seg_impl.1} parent=1 // pred_region
      _
    $region45: #{_dsg_seg_impl.1} parent=1 // pred_fallthru
      _
    %334 = vsyncpa [#allocation3], 1
    %335 = vsyncpa [#allocation5], 1
    %336 = vsyncpa [#allocation8], 1

// kernel: _dsg_seg_impl.1
$region0: #{_dsg_seg_impl.1}
  #allocation0 [shape = 'u32[]', space=smem, size = 0x4, offset = 0x4, fixed_abs, tag = 'smem constant byte address 0x4 - core index']
  #allocation1 [shape = 'u32[144,128]{1,0:T(1,128)}', space=vmem, size = 0x12000, scoped, tag = 'internal scratch']
  %s0 = inlined_call_operand.hbm [shape: f32[2,16,32], index: 0, kind: input, shape index: {}]
  %s1 = inlined_call_operand.hbm [shape: f32[2,16,16], index: 1, kind: input, shape index: {}]
  %s2 = inlined_call_operand.hbm [shape: f32[32,32], index: 2, kind: input, shape index: {}]
  %s3 = inlined_call_operand.hbm [shape: f32[32,128], index: 3, kind: input, shape index: {}]
  %s4 = inlined_call_operand.vmem [shape: f32[1,128], index: 4, kind: input, shape index: {}]
  %s5 = inlined_call_operand.vmem [shape: f32[2,16,128], index: 5, kind: output, shape index: {}]
  %s6 = sld [smem:[#allocation0]]
  $region46: #{_dsg_seg_impl.1} parent=0
    _
  %s8 = ssub.s32 1, %s6
  %s9 = scalar_select 0, %s8, %s6
  $region1: #{_dsg_seg_impl.1} parent=0
    #allocation2 [shape = 'u8[16384]{0}', space=vmem, size = 0x4000, scoped, tag = 'input window, operand 0, single buffered']
    #allocation3 [shape = 's32[1]{0}', space=sflag, size = 0x4, scoped, tag = 'scoped memory for _dsg_seg_impl.1']
    #allocation4 [shape = 'u8[16384]{0}', space=vmem, size = 0x4000, scoped, tag = 'input window, operand 1, single buffered']
    #allocation5 [shape = 's32[1]{0}', space=sflag, size = 0x4, scoped, tag = 'scoped memory for _dsg_seg_impl.1']
    #allocation6 [shape = 'u8[16384]{0}', space=vmem, size = 0x4000, scoped, tag = 'input window, operand 2, single buffered']
    #allocation7 [shape = 'u8[16384]{0}', space=vmem, size = 0x4000, scoped, tag = 'input window, operand 3, single buffered']
    #allocation8 [shape = 's32[1]{0}', space=sflag, size = 0x4, scoped, tag = 'scoped memory for _dsg_seg_impl.1']
    %10 = vsyncpa [#allocation3], 0
    %11 = vsyncpa [#allocation5], 0
    %12 = vsyncpa [#allocation8], 0
    // Predicated region
    $region2: #{_dsg_seg_impl.1} parent=1 // pred_check
      _
    $region3: #{_dsg_seg_impl.1} parent=1 // pred_check_branch
      %14 = sbr.rel (0) target = $region5
    $region4: #{_dsg_seg_impl.1} parent=1 // pred_region
      %s16 = ssub.s32 512, 512
      %17 = vsyncadd [#allocation3], %s16
      %s18 = sshll.u32 [#allocation2], 4
      %s19 = int_to_ptr.vmem [resolvable:$true] %s18
      %24 = dma.hbm_to_vmem [thread:$0]  %s0, 512, %s19, [#allocation3], 128, 128, 8
    $region5: #{_dsg_seg_impl.1} parent=1 // pred_fallthru
      _
    // Predicated region
    $region6: #{_dsg_seg_impl.1} parent=1 // pred_check
      _
    $region7: #{_dsg_seg_impl.1} parent=1 // pred_check_branch
      %26 = sbr.rel (0) target = $region9
    $region8: #{_dsg_seg_impl.1} parent=1 // pred_region
      %s28 = ssub.s32 512, 512
      %29 = vsyncadd [#allocation5], %s28
      %s30 = sshll.u32 [#allocation4], 4
      %s31 = int_to_ptr.vmem [resolvable:$true] %s30
      %36 = dma.hbm_to_vmem [thread:$0]  %s1, 512, %s31, [#allocation5], 128, 128, 8
    $region9: #{_dsg_seg_impl.1} parent=1 // pred_fallthru
      _
    // Predicated region
    $region10: #{_dsg_seg_impl.1} parent=1 // pred_check
      _
    $region11: #{_dsg_seg_impl.1} parent=1 // pred_check_branch
      %38 = sbr.rel (0) target = $region13
    $region12: #{_dsg_seg_impl.1} parent=1 // pred_region
      %s40 = ssub.s32 512, 512
      %41 = vsyncadd [#allocation5], %s40
      %s42 = sshll.u32 [#allocation6], 4
      %s43 = int_to_ptr.vmem [resolvable:$true] %s42
      %48 = dma.hbm_to_vmem [thread:$0]  %s2, 512, %s43, [#allocation5], 128, 128, 8
    $region13: #{_dsg_seg_impl.1} parent=1 // pred_fallthru
      _
    // Predicated region
    $region14: #{_dsg_seg_impl.1} parent=1 // pred_check
      _
    $region15: #{_dsg_seg_impl.1} parent=1 // pred_check_branch
      %50 = sbr.rel (0) target = $region17
    $region16: #{_dsg_seg_impl.1} parent=1 // pred_region
      %s52 = ssub.s32 512, 512
      %53 = vsyncadd [#allocation8], %s52
      %s54 = sshll.u32 [#allocation7], 4
      %s55 = int_to_ptr.vmem [resolvable:$true] %s54
      %60 = dma.hbm_to_vmem [thread:$0]  %s3, 512, %s55, [#allocation8], 128, 128, 8
    $region17: #{_dsg_seg_impl.1} parent=1 // pred_fallthru
      _
    // Predicated region
    $region18: #{_dsg_seg_impl.1} parent=1 // pred_check
      _
    $region19: #{_dsg_seg_impl.1} parent=1 // pred_check_branch
      %62 = sbr.rel (0) target = $region21
    $region20: #{_dsg_seg_impl.1} parent=1 // pred_region
      _
    $region21: #{_dsg_seg_impl.1} parent=1 // pred_fallthru
      _
    // Predicated region
    $region22: #{_dsg_seg_impl.1} parent=1 // pred_check
      _
    $region23: #{_dsg_seg_impl.1} parent=1 // pred_check_branch
      %64 = sbr.rel (0) target = $region25
    $region24: #{_dsg_seg_impl.1} parent=1 // pred_region
      %65 = dma.done [#allocation3], 512
    $region25: #{_dsg_seg_impl.1} parent=1 // pred_fallthru
      _
    // Predicated region
    $region26: #{_dsg_seg_impl.1} parent=1 // pred_check
      _
    $region27: #{_dsg_seg_impl.1} parent=1 // pred_check_branch
      %67 = sbr.rel (0) target = $region29
    $region28: #{_dsg_seg_impl.1} parent=1 // pred_region
      %68 = dma.done [#allocation5], 512
    $region29: #{_dsg_seg_impl.1} parent=1 // pred_fallthru
      _
    // Predicated region
    $region30: #{_dsg_seg_impl.1} parent=1 // pred_check
      _
    $region31: #{_dsg_seg_impl.1} parent=1 // pred_check_branch
      %70 = sbr.rel (0) target = $region33
    $region32: #{_dsg_seg_impl.1} parent=1 // pred_region
      %71 = dma.done [#allocation5], 512
    $region33: #{_dsg_seg_impl.1} parent=1 // pred_fallthru
      _
    // Predicated region
    $region34: #{_dsg_seg_impl.1} parent=1 // pred_check
      _
    $region35: #{_dsg_seg_impl.1} parent=1 // pred_check_branch
      %73 = sbr.rel (0) target = $region37
    $region36: #{_dsg_seg_impl.1} parent=1 // pred_region
      %74 = dma.done [#allocation8], 512
    $region37: #{_dsg_seg_impl.1} parent=1 // pred_fallthru
      _
    %v75 = vld [vmem:[#allocation2] sm:$0xff]
    %v76 = vld [vmem:[#allocation2 + $0x8] sm:$0xff]
    %v77 = vld [vmem:[#allocation2 + $0x10] sm:$0xff]
    %v78 = vld [vmem:[#allocation2 + $0x18] sm:$0xff]
    %v79 = vld [vmem:[#allocation4] sm:$0xff]
    %v80 = vld [vmem:[#allocation4 + $0x8] sm:$0xff]
    %v81 = vld [vmem:[#allocation4 + $0x10] sm:$0xff]
    %v82 = vld [vmem:[#allocation4 + $0x18] sm:$0xff]
    %v83 = vld [vmem:[#allocation6] sm:$0xff]
    %v84 = vld [vmem:[#allocation6 + $0x8] sm:$0xff]
    %v85 = vld [vmem:[#allocation6 + $0x10] sm:$0xff]
    %v86 = vld [vmem:[#allocation6 + $0x18] sm:$0xff]
    %v87 = vld [vmem:[#allocation7] sm:$0xff]
    %v88 = vld [vmem:[#allocation7 + $0x8] sm:$0xff]
    %v89 = vld [vmem:[#allocation7 + $0x10] sm:$0xff]
    %v90 = vld [vmem:[#allocation7 + $0x18] sm:$0xff]
    %v91 = vld [vmem:[%s4] sm:$0x1]
    %vm92 = vcmask 261120
    %v94 = vsel %vm92, %v75, 0
    %v97 = vsel %vm92, %v76, 0
    %v100 = vsel %vm92, %v77, 0
    %v103 = vsel %vm92, %v78, 0
    %105 = vmatprep.subr.mxu0 0.0
    %106 = vmatpush1.msra.mxu0 0.0
    %107 = vmatprep.subr.mxu0 0.0
    %108 = vmatpush1.msra.mxu0 0.0
    %109 = vmatprep.subr.mxu0 0.0
    %110 = vmatpush1.msra.mxu0 0.0
    %111 = vmatprep.subr.mxu0 0.0
    %112 = vmatpush1.msra.mxu0 0.0
    %113 = vmatprep.subr.mxu0 0.0
    %114 = vmatpush1.msra.mxu0 0.0
    %115 = vmatprep.subr.mxu0 0.0
    %116 = vmatpush1.msra.mxu0 0.0
    %117 = vmatprep.subr.mxu0 0.0
    %118 = vmatpush1.msra.mxu0 0.0
    %119 = vmatprep.subr.mxu0 0.0
    %120 = vmatpush1.msra.mxu0 0.0
    %121 = vmatprep.subr.mxu0 0.0
    %122 = vmatpush1.msra.mxu0 0.0
    %123 = vmatprep.subr.mxu0 0.0
    %124 = vmatpush1.msra.mxu0 0.0
    %125 = vmatprep.subr.mxu0 0.0
    %126 = vmatpush1.msra.mxu0 0.0
    %127 = vmatprep.subr.mxu0 0.0
    %128 = vmatpush1.msra.mxu0 0.0
    %129 = vmatprep.subr.mxu0 0.0
    %130 = vmatpush1.msra.mxu0 %v90
    %131 = vmatprep.subr.mxu0 0.0
    %132 = vmatpush1.msra.mxu0 %v89
    %133 = vmatprep.subr.mxu0 0.0
    %134 = vmatpush1.msra.mxu0 %v88
    %135 = vmatprep.subr.mxu0 0.0
    %136 = vmatpush1.msra.mxu0 %v87
    %137 = vmatprep.subr.mxu0 0.0
    %138 = vmatpush2.msra.mxu0 0.0
    %139 = vmatprep.subr.mxu0 0.0
    %140 = vmatpush2.msra.mxu0 0.0
    %141 = vmatprep.subr.mxu0 0.0
    %142 = vmatpush2.msra.mxu0 0.0
    %143 = vmatprep.subr.mxu0 0.0
    %144 = vmatpush2.msra.mxu0 0.0
    %145 = vmatprep.subr.mxu0 0.0
    %146 = vmatpush2.msra.mxu0 0.0
    %147 = vmatprep.subr.mxu0 0.0
    %148 = vmatpush2.msra.mxu0 0.0
    %149 = vmatprep.subr.mxu0 0.0
    %150 = vmatpush2.msra.mxu0 0.0
    %151 = vmatprep.subr.mxu0 0.0
    %152 = vmatpush2.msra.mxu0 0.0
    %153 = vmatprep.subr.mxu0 0.0
    %154 = vmatpush2.msra.mxu0 0.0
    %155 = vmatprep.subr.mxu0 0.0
    %156 = vmatpush2.msra.mxu0 0.0
    %157 = vmatprep.subr.mxu0 0.0
    %158 = vmatpush2.msra.mxu0 0.0
    %159 = vmatprep.subr.mxu0 0.0
    %160 = vmatpush2.msra.mxu0 0.0
    %161 = vmatprep.subr.mxu0 0.0
    %162 = vmatpush2.msra.mxu0 0.0
    %163 = vmatprep.subr.mxu0 0.0
    %164 = vmatpush2.msra.mxu0 0.0
    %165 = vmatprep.subr.mxu0 0.0
    %166 = vmatpush2.msra.mxu0 0.0
    %167 = vmatprep.subr.mxu0 0.0
    %168 = vmatpush2.msra.mxu0 0.0
    %169 = vmatprep.mubr.f32.mxu0 0.0
    %170 = vmatmul.mubr.f32.gmra.mxu0 %v94
    %v171 = vpop.f32.mrf.mxu0
    %v172 = vadd.f32 0.0, %v171
    %v173 = vpop.f32.mrf.mxu0
    %174 = vmatprep.mubr.f32.mxu0 0.0
    %175 = vmatmul.mubr.f32.gmra.mxu0 %v97
    %v176 = vpop.f32.mrf.mxu0
    %v177 = vadd.f32 0.0, %v176
    %v178 = vpop.f32.mrf.mxu0
    %179 = vmatprep.mubr.f32.mxu0 0.0
    %180 = vmatmul.mubr.f32.gmra.mxu0 %v100
    %v181 = vpop.f32.mrf.mxu0
    %v182 = vadd.f32 0.0, %v181
    %v183 = vpop.f32.mrf.mxu0
    %184 = vmatprep.mubr.f32.mxu0 0.0
    %185 = vmatmul.mubr.f32.gmra.mxu0 %v103
    %v186 = vpop.f32.mrf.mxu0
    %v187 = vadd.f32 0.0, %v186
    %v188 = vpop.f32.mrf.mxu0
    %189 = vdwg.mxu0
    %194 = vrot.lane.b32.xlu0 %v79, 16
    %v195 = vpop.permute.xlu0 %194
    %196 = vrot.lane.b32.xlu0 %v80, 16
    %v197 = vpop.permute.xlu0 %196
    %198 = vrot.lane.b32.xlu0 %v81, 16
    %v199 = vpop.permute.xlu0 %198
    %200 = vrot.lane.b32.xlu0 %v82, 16
    %v201 = vpop.permute.xlu0 %200
    %vm206 = vcmask 130048
    %v207 = vsel %vm206, %v79, %v195
    %v208 = vsel %vm206, %v80, %v197
    %v209 = vsel %vm206, %v81, %v199
    %v210 = vsel %vm206, %v82, %v201
    %v211 = vmul.f32 %v207, %v83
    %v212 = vmul.f32 %v208, %v84
    %v213 = vmul.f32 %v209, %v85
    %v214 = vmul.f32 %v210, %v86
    %v216 = vsel %vm92, %v211, 0
    %v219 = vsel %vm92, %v212, 0
    %v222 = vsel %vm92, %v213, 0
    %v225 = vsel %vm92, %v214, 0
    %227 = vmatprep.subr.mxu0 0.0
    %228 = vmatpush1.msra.mxu0 0.0
    %229 = vmatprep.subr.mxu0 0.0
    %230 = vmatpush1.msra.mxu0 0.0
    %231 = vmatprep.subr.mxu0 0.0
    %232 = vmatpush1.msra.mxu0 0.0
    %233 = vmatprep.subr.mxu0 0.0
    %234 = vmatpush1.msra.mxu0 0.0
    %235 = vmatprep.subr.mxu0 0.0
    %236 = vmatpush1.msra.mxu0 0.0
    %237 = vmatprep.subr.mxu0 0.0
    %238 = vmatpush1.msra.mxu0 0.0
    %239 = vmatprep.subr.mxu0 0.0
    %240 = vmatpush1.msra.mxu0 0.0
    %241 = vmatprep.subr.mxu0 0.0
    %242 = vmatpush1.msra.mxu0 0.0
    %243 = vmatprep.subr.mxu0 0.0
    %244 = vmatpush1.msra.mxu0 0.0
    %245 = vmatprep.subr.mxu0 0.0
    %246 = vmatpush1.msra.mxu0 0.0
    %247 = vmatprep.subr.mxu0 0.0
    %248 = vmatpush1.msra.mxu0 0.0
    %249 = vmatprep.subr.mxu0 0.0
    %250 = vmatpush1.msra.mxu0 0.0
    %251 = vmatprep.subr.mxu0 0.0
    %252 = vmatpush1.msra.mxu0 %v187
    %253 = vmatprep.subr.mxu0 0.0
    %254 = vmatpush1.msra.mxu0 %v182
    %255 = vmatprep.subr.mxu0 0.0
    %256 = vmatpush1.msra.mxu0 %v177
    %257 = vmatprep.subr.mxu0 0.0
    %258 = vmatpush1.msra.mxu0 %v172
    %259 = vmatprep.subr.mxu0 0.0
    %260 = vmatpush2.msra.mxu0 0.0
    %261 = vmatprep.subr.mxu0 0.0
    %262 = vmatpush2.msra.mxu0 0.0
    %263 = vmatprep.subr.mxu0 0.0
    %264 = vmatpush2.msra.mxu0 0.0
    %265 = vmatprep.subr.mxu0 0.0
    %266 = vmatpush2.msra.mxu0 0.0
    %267 = vmatprep.subr.mxu0 0.0
    %268 = vmatpush2.msra.mxu0 0.0
    %269 = vmatprep.subr.mxu0 0.0
    %270 = vmatpush2.msra.mxu0 0.0
    %271 = vmatprep.subr.mxu0 0.0
    %272 = vmatpush2.msra.mxu0 0.0
    %273 = vmatprep.subr.mxu0 0.0
    %274 = vmatpush2.msra.mxu0 0.0
    %275 = vmatprep.subr.mxu0 0.0
    %276 = vmatpush2.msra.mxu0 0.0
    %277 = vmatprep.subr.mxu0 0.0
    %278 = vmatpush2.msra.mxu0 0.0
    %279 = vmatprep.subr.mxu0 0.0
    %280 = vmatpush2.msra.mxu0 0.0
    %281 = vmatprep.subr.mxu0 0.0
    %282 = vmatpush2.msra.mxu0 0.0
    %283 = vmatprep.subr.mxu0 0.0
    %284 = vmatpush2.msra.mxu0 0.0
    %285 = vmatprep.subr.mxu0 0.0
    %286 = vmatpush2.msra.mxu0 0.0
    %287 = vmatprep.subr.mxu0 0.0
    %288 = vmatpush2.msra.mxu0 0.0
    %289 = vmatprep.subr.mxu0 0.0
    %290 = vmatpush2.msra.mxu0 0.0
    %291 = vmatprep.mubr.f32.mxu0 0.0
    %292 = vmatmul.mubr.f32.gmra.mxu0 %v216
    %v293 = vpop.f32.mrf.mxu0
    %v294 = vadd.f32 0.0, %v293
    %v295 = vpop.f32.mrf.mxu0
    %296 = vmatprep.mubr.f32.mxu0 0.0
    %297 = vmatmul.mubr.f32.gmra.mxu0 %v219
    %v298 = vpop.f32.mrf.mxu0
    %v299 = vadd.f32 0.0, %v298
    %v300 = vpop.f32.mrf.mxu0
    %301 = vmatprep.mubr.f32.mxu0 0.0
    %302 = vmatmul.mubr.f32.gmra.mxu0 %v222
    %v303 = vpop.f32.mrf.mxu0
    %v304 = vadd.f32 0.0, %v303
    %v305 = vpop.f32.mrf.mxu0
    %306 = vmatprep.mubr.f32.mxu0 0.0
    %307 = vmatmul.mubr.f32.gmra.mxu0 %v225
    %v308 = vpop.f32.mrf.mxu0
    %v309 = vadd.f32 0.0, %v308
    %v310 = vpop.f32.mrf.mxu0
    %311 = vdwg.mxu0
    %v313 = vlaneseq
    %v314 = vshrl.u32 %v313, 7
    %v315 = vsub.s32 0, %v314
    %v316 = vrot.slane %v91, %v315
    %v318 = vadd.f32 %v294, %v316
    %v319 = vadd.f32 %v299, %v316
    %v320 = vadd.f32 %v304, %v316
    %v321 = vadd.f32 %v309, %v316
    %v322 = vtanh.pop %v318
    %v323 = vtanh.pop %v319
    %v324 = vtanh.pop %v320
    %v325 = vtanh.pop %v321
    %326 = vst [vmem:[%s5] sm:$0xff] %v322
    %327 = vst [vmem:[%s5 + $0x8] sm:$0xff] %v323
    %328 = vst [vmem:[%s5 + $0x10] sm:$0xff] %v324
    %329 = vst [vmem:[%s5 + $0x18] sm:$0xff] %v325
    // Predicated region
    $region38: #{_dsg_seg_impl.1} parent=1 // pred_check
      _
    $region39: #{_dsg_seg_impl.1} parent=1 // pred_check_branch
      %331 = sbr.rel (0) target = $region41
    $region40: #{_dsg_seg_impl.1} parent=1 // pred_region
      _
    $region41: #{_dsg_seg_impl.1} parent=1 // pred_fallthru
      _
    // Predicated region
    $region42: #{_dsg_seg_impl.1} parent=1 // pred_check
      _
    $region43: #{_dsg_seg_impl.1} parent=1 // pred_check_branch
      %333 = sbr.rel (0) target = $region45
    $region44: #{_dsg_seg_impl.1} parent=1 // pred_region
      _
    $region45: #{_dsg_seg_impl.1} parent=1 // pred_fallthru
      _
    %334 = vsyncpa [#allocation3], 1
    %335 = vsyncpa [#allocation5], 1
    %336 = vsyncpa [#allocation8], 1

</llo_original>
